<compile_context>
chip_gen: v5e
topology: v5e:2x2
jax: 0.10.0
libtpu: 0.0.40
codegen_flags: <defaults>
</compile_context>

<pallas_src>
import functools

import jax
import jax.numpy as jnp
from jax import lax
from jax.experimental import pallas as pl
from jax.experimental.pallas import tpu as pltpu


def _attn_kernel(x_ref, mt_ref, v_ref, gamma_ref, out_ref, attn_ref, *,
                 n_valid, tq, q_axis, mxu_dtype):
    """One (batch, query-tile) grid step.

    x_ref    : (1, C, Np)   full (padded) image, resident across query tiles
    mt_ref   : (C, C)       Wk^T @ Wq   == (Wq^T Wk)^T
    v_ref    : (C, 1)       Wk^T @ bq   (per-key-column bias term)
    gamma_ref: (1,)         residual scale, SMEM
    out_ref  : (1, C, TQ)   output columns for this query tile
    attn_ref : (1, TQ, Np)  attention rows for this query tile
    """
    n_pad = x_ref.shape[2]
    q = pl.program_id(q_axis)
    q0 = pl.multiple_of(q * tq, tq)             # tq is a multiple of 128 -> lane aligned

    x = x_ref[0]                                # (C, Np)  f32
    xq = x_ref[0, :, pl.ds(q0, tq)]             # (C, TQ)  f32, in-VMEM slice (no 2nd HBM stream)

    # MXU operands in mxu_dtype (bf16 by default); accumulation stays f32.
    x_m = x.astype(mxu_dtype)
    mt_m = mt_ref[...].astype(mxu_dtype)

    # t2[c, n] = sum_{c'} (Wq^T Wk)[c', c] * xq[c', n] + (Wk^T bq)[c]
    t2 = jnp.dot(mt_m, xq.astype(mxu_dtype),
                 preferred_element_type=jnp.float32) + v_ref[...]      # (C, TQ) f32

    # energy[n, m] = sum_c t2[c, n] * x[c, m]  == q_n . k_m up to per-row consts
    # that cancel in the softmax.  Contract dim0-with-dim0: no transpose.
    energy = lax.dot_general(t2.astype(mxu_dtype), x_m,
                             (((0,), (0,)), ((), ())),
                             preferred_element_type=jnp.float32)       # (TQ, Np) f32

    if n_valid != n_pad:
        col = lax.broadcasted_iota(jnp.int32, energy.shape, 1)
        energy = jnp.where(col < n_valid, energy, jnp.float32(-1e30))

    # Row softmax, exact (full key dimension present), all in f32.
    row_max = jnp.max(energy, axis=-1, keepdims=True)
    p = jnp.exp(energy - row_max)
    denom = jnp.sum(p, axis=-1, keepdims=True)
    attn = p * pl.reciprocal(denom, approx=True)                       # (TQ, Np) f32
    attn_ref[0] = attn.astype(attn_ref.dtype)

    # out[:, n] = sum_m x[:, m] * attn[n, m]  -> contract last dims (no attn^T).
    out = lax.dot_general(x_m, attn.astype(mxu_dtype),
                          (((1,), (1,)), ((), ())),
                          preferred_element_type=jnp.float32)          # (C, TQ) f32
    out_ref[0] = (gamma_ref[0] * out + xq).astype(out_ref.dtype)


def _device_vmem_bytes():
    """Best-effort per-TensorCore VMEM capacity; conservative fallback (v7x)."""
    try:
        info = pltpu.get_tpu_info()
        v = getattr(info, "vmem_capacity_bytes", None)
        if v:
            return int(v)
    except Exception:
        pass
    return 64 * 1024 * 1024


def attn_forward(x, wq, bq, wk, bk, gamma, *, tq=None,
                 mxu_dtype=jnp.bfloat16, attn_dtype=None):
    """x: (B, C, W, H) f32.  Returns (out (B,C,W,H), attention (B,N,N)), N=W*H.

    Mirrors PyTorch Attn.forward.  `bk` only shifts the energy by per-query-row
    / global constants which cancel in the row softmax, so it does not affect
    the returned (out, attention); it is accepted for API parity.
    `mxu_dtype` controls the matmul-operand precision (bf16 default; softmax
    math is always f32).  `attn_dtype` controls the attention output dtype
    (default x.dtype; bf16 halves the dominant HBM writeback).
    """
    B, C, W, H = x.shape
    N = W * H
    n_pad = ((N + 127) // 128) * 128            # lane-dense last dim
    attn_dtype = x.dtype if attn_dtype is None else attn_dtype

    vmem_cap = _device_vmem_bytes()

    # Generation-aware query tile: 256 on 128-MiB-VMEM parts (v5e/v6e) when the
    # image is large enough, 128 otherwise (v7x has 64 MiB VMEM per TC).
    if tq is None:
        tq = 256 if (vmem_cap >= (100 << 20) and n_pad >= 256) else 128
    tq = min(tq, n_pad)
    while n_pad % tq:
        tq //= 2
    n_q = n_pad // tq

    x_flat = x.reshape(B, C, N).astype(jnp.float32)
    if n_pad != N:
        x_flat = jnp.pad(x_flat, ((0, 0), (0, 0), (0, n_pad - N)))

    # Fold the two 1x1 convs into a single C-deep contraction (weights only).
    mt = jnp.dot(wk.T, wq)                      # (C, C) == (Wq^T Wk)^T
    v = jnp.dot(wk.T, bq).reshape(C, 1)         # (C, 1)
    gamma1 = jnp.asarray(gamma, jnp.float32).reshape(1)

    # Explicit VMEM budget: double-buffered x block + out blocks + softmax
    # temps, with margin, clamped to 3/4 of the device capacity so the same
    # code compiles on v5e/v6e (128 MiB) and v7x (64 MiB).
    attn_bytes = jnp.dtype(attn_dtype).itemsize
    need = (2 * C * n_pad * 4 + 2 * C * tq * 4 + 2 * tq * n_pad * attn_bytes
            + 4 * tq * n_pad * 4 + 2 * C * C * 4 + 4096)
    vmem_limit = max(32 << 20, min(int(need * 3 // 2) + (8 << 20),
                                   vmem_cap * 3 // 4))

    # Megacore balance: with B == 1 the batch axis can't shard across the two
    # v7x TensorCores, so put the query-tile axis first (x residency is kept
    # because the x block index is then constant).
    q_major = (B == 1 and n_q > 1)
    if q_major:
        grid = (n_q, B)
        q_axis = 0
        x_map = lambda q, b: (b, 0, 0)
        w_map = lambda q, b: (0, 0)
        out_map = lambda q, b: (b, 0, q)
        attn_map = lambda q, b: (b, q, 0)
    else:
        grid = (B, n_q)
        q_axis = 1
        x_map = lambda b, q: (b, 0, 0)
        w_map = lambda b, q: (0, 0)
        out_map = lambda b, q: (b, 0, q)
        attn_map = lambda b, q: (b, q, 0)

    kernel = functools.partial(_attn_kernel, n_valid=N, tq=tq, q_axis=q_axis,
                               mxu_dtype=mxu_dtype)

    out_flat, attention = pl.pallas_call(
        kernel,
        out_shape=(
            jax.ShapeDtypeStruct((B, C, n_pad), x.dtype),
            jax.ShapeDtypeStruct((B, n_pad, n_pad), attn_dtype),
        ),
        grid_spec=pltpu.PrefetchScalarGridSpec(
            num_scalar_prefetch=0,
            grid=grid,
            in_specs=[
                pl.BlockSpec((1, C, n_pad), x_map),                  # x (resident over q)
                pl.BlockSpec((C, C), w_map),                         # Wk^T Wq
                pl.BlockSpec((C, 1), w_map),                         # Wk^T bq
                pl.BlockSpec(memory_space=pltpu.MemorySpace.SMEM),   # gamma
            ],
            out_specs=[
                pl.BlockSpec((1, C, tq), out_map),                   # out columns
                pl.BlockSpec((1, tq, n_pad), attn_map),              # attention rows
            ],
        ),
        compiler_params=pltpu.CompilerParams(
            dimension_semantics=("parallel", "parallel"),
            vmem_limit_bytes=int(vmem_limit),
        ),
    )(x_flat, mt, v, gamma1)

    out = out_flat[:, :, :N].reshape(B, C, W, H)
    # TODO(synk): when N % 128 != 0 this un-pad slice is an extra O(B*N^2) HBM
    # round-trip in XLA; callers that can consume padded attention should.
    attention = attention[:, :N, :N] if n_pad != N else attention
    return out, attention


def attn_reference(x, wq, bq, wk, bk, gamma):
    """Pure-JAX reference mirroring the PyTorch forward exactly."""
    B, C, W, H = x.shape
    N = W * H
    xf = x.reshape(B, C, N)
    q = jnp.einsum('oc,bcn->bon', wq, xf) + bq[None, :, None]   # (B, Cq, N)
    k = jnp.einsum('oc,bcn->bon', wk, xf) + bk[None, :, None]
    energy = jnp.einsum('bcn,bcm->bnm', q, k)                   # (B, N, N)
    attn = jax.nn.softmax(energy, axis=-1)
    out = jnp.einsum('bcn,bmn->bcm', xf, attn)                  # (B, C, N)
    out = gamma * out + xf
    return out.reshape(B, C, W, H), attn


if __name__ == "__main__":
    def check(got, want, atol, rtol, name):
        got = jnp.asarray(got, jnp.float32)
        ok = jnp.allclose(got, want, atol=atol, rtol=rtol)
        assert ok, (name, float(jnp.max(jnp.abs(got - want))))

    def run_case(B, C, W, H):
        Cq = C // 4
        key = jax.random.PRNGKey(0)
        kx, kwq, kbq, kwk, kbk = jax.random.split(key, 5)

        x = jax.random.normal(kx, (B, C, W, H), dtype=jnp.float32)
        # 1x1 conv weights (Cq, C, 1, 1) -> (Cq, C).
        wq = jax.random.normal(kwq, (Cq, C), dtype=jnp.float32) * 0.1
        bq = jax.random.normal(kbq, (Cq,), dtype=jnp.float32) * 0.1
        wk = jax.random.normal(kwk, (Cq, C), dtype=jnp.float32) * 0.1
        bk = jax.random.normal(kbk, (Cq,), dtype=jnp.float32) * 0.1
        # Module inits gamma to 0 (out == x); nonzero so the attention path
        # actually contributes in this synthetic test.
        gamma = jnp.array(0.5, dtype=jnp.float32)

        out_ref, attn_r = attn_reference(x, wq, bq, wk, bk, gamma)

        # Default fast path: bf16 MXU operands, f32 softmax, f32 attention out.
        out, attn = attn_forward(x, wq, bq, wk, bk, gamma)
        out = jax.block_until_ready(out)
        attn = jax.block_until_ready(attn)
        check(attn, attn_r, 3e-3, 1e-2, "attn/bf16-mxu")
        check(out, out_ref, 1e-2, 1e-2, "out/bf16-mxu")

        # Full f32 MXU path: validates exact forward semantics at tight tolerance.
        out32, attn32 = attn_forward(x, wq, bq, wk, bk, gamma,
                                     mxu_dtype=jnp.float32)
        out32 = jax.block_until_ready(out32)
        attn32 = jax.block_until_ready(attn32)
        check(attn32, attn_r, 5e-4, 5e-3, "attn/f32-mxu")
        check(out32, out_ref, 2e-3, 2e-3, "out/f32-mxu")

        # bf16 attention writeback (halves the dominant HBM traffic) — sanity.
        out_b, attn_b = attn_forward(x, wq, bq, wk, bk, gamma,
                                     attn_dtype=jnp.bfloat16)
        out_b = jax.block_until_ready(out_b)
        attn_b = jax.block_until_ready(attn_b)
        check(attn_b, attn_r, 5e-3, 3e-2, "attn/bf16-out")
        check(out_b, out_ref, 1e-2, 1e-2, "out/bf16-out")

    # N = 64 (< 128): exercises lane padding + key-column masking.
    run_case(2, 16, 8, 8)
    # N = 256: multiple query tiles per batch element.
    run_case(2, 16, 16, 16)
    # B = 1: exercises the query-major grid ordering (megacore balance path).
    run_case(1, 16, 16, 16)

    print("KERNEL_OK")
</pallas_src>

<mosaic_0001>
module attributes {stable_mosaic.version = 11 : i64} {
  func.func @_attn_kernel(%arg0: i32, %arg1: i32, %arg2: memref<1x16x128xf32, #tpu.memory_space<vmem>>, %arg3: memref<16x16xf32, #tpu.memory_space<vmem>>, %arg4: memref<16x1xf32, #tpu.memory_space<vmem>>, %arg5: memref<1xf32, #tpu.memory_space<smem>>, %arg6: memref<1x16x128xf32, #tpu.memory_space<vmem>>, %arg7: memref<1x128x128xf32, #tpu.memory_space<vmem>>) attributes {dimension_semantics = [#tpu.dimension_semantics<parallel>, #tpu.dimension_semantics<parallel>], iteration_bounds = array<i64: 2, 1>, scalar_prefetch = 0 : i64, scratch_operands = 0 : i64, tpu.core_type = #tpu.core_type<tc>, window_params = [{transform_indices = @transform_0, window_bounds = array<i64: 1, 16, 128>}, {pipeline_mode = #tpu.pipeline_mode<synchronous>, transform_indices = @transform_1, window_bounds = array<i64: 16, 16>}, {pipeline_mode = #tpu.pipeline_mode<synchronous>, transform_indices = @transform_2, window_bounds = array<i64: 16, 1>}, {transform_indices = @transform_3, window_bounds = array<i64: 1>}, {transform_indices = @transform_4, window_bounds = array<i64: 1, 16, 128>}, {transform_indices = @transform_5, window_bounds = array<i64: 1, 128, 128>}]} {
    %c128_i32 = arith.constant 128 : i32
    %0 = arith.muli %arg1, %c128_i32 : i32
    %1 = tpu.assume_multiple %0, 128 : i32
    %c0 = arith.constant 0 : index
    %c0_0 = arith.constant 0 : index
    %c0_1 = arith.constant 0 : index
    %2 = vector.load %arg2[%c0, %c0_0, %c0_1] : memref<1x16x128xf32, #tpu.memory_space<vmem>>, vector<1x16x128xf32>
    %3 = vector.shape_cast %2 : vector<1x16x128xf32> to vector<16x128xf32>
    %c0_2 = arith.constant 0 : index
    %c0_3 = arith.constant 0 : index
    %4 = arith.index_cast %1 : i32 to index
    %5 = vector.load %arg2[%c0_2, %c0_3, %4] : memref<1x16x128xf32, #tpu.memory_space<vmem>>, vector<1x16x128xf32>
    %6 = vector.shape_cast %5 : vector<1x16x128xf32> to vector<16x128xf32>
    %7 = arith.truncf %3 : vector<16x128xf32> to vector<16x128xbf16>
    %c0_4 = arith.constant 0 : index
    %c0_5 = arith.constant 0 : index
    %8 = vector.load %arg3[%c0_4, %c0_5] : memref<16x16xf32, #tpu.memory_space<vmem>>, vector<16x16xf32>
    %9 = arith.truncf %8 : vector<16x16xf32> to vector<16x16xbf16>
    %10 = arith.truncf %6 : vector<16x128xf32> to vector<16x128xbf16>
    %cst = arith.constant dense<0.000000e+00> : vector<16x128xf32>
    %11 = tpu.matmul %9, %10, %cst {dimension_numbers = #tpu.dot_dimension_numbers<[1], [0], [0], [1], [0, 0, 1, 1], [], []>} : vector<16x16xbf16>, vector<16x128xbf16>, vector<16x128xf32> -> vector<16x128xf32>
    %c0_6 = arith.constant 0 : index
    %c0_7 = arith.constant 0 : index
    %12 = vector.load %arg4[%c0_6, %c0_7] : memref<16x1xf32, #tpu.memory_space<vmem>>, vector<16x1xf32>
    %13 = vector.broadcast %12 : vector<16x1xf32> to vector<16x128xf32>
    %14 = arith.addf %11, %13 : vector<16x128xf32>
    %15 = arith.truncf %14 : vector<16x128xf32> to vector<16x128xbf16>
    %cst_8 = arith.constant dense<0.000000e+00> : vector<128x128xf32>
    %16 = tpu.matmul %15, %7, %cst_8 {dimension_numbers = #tpu.dot_dimension_numbers<[0], [0], [1], [1], [0, 1, 1, 1], [], []>} : vector<16x128xbf16>, vector<16x128xbf16>, vector<128x128xf32> -> vector<128x128xf32>
    %17 = tpu.iota {dimensions = array<i32: 1>} : vector<128x128xi32>
    %c64_i32 = arith.constant 64 : i32
    %18 = vector.broadcast %c64_i32 : i32 to vector<128x128xi32>
    %19 = arith.cmpi slt, %17, %18 : vector<128x128xi32>
    %cst_9 = arith.constant -1.000000e+30 : f32
    %20 = vector.broadcast %cst_9 : f32 to vector<128x128xf32>
    %21 = arith.select %19, %16, %20 : vector<128x128xi1>, vector<128x128xf32>
    %cst_10 = arith.constant dense<0xFF800000> : vector<128xf32>
    %22 = vector.multi_reduction <maximumf>, %21, %cst_10 [1] : vector<128x128xf32> to vector<128xf32>
    %23 = vector.shape_cast %22 : vector<128xf32> to vector<128x1xf32>
    %24 = vector.broadcast %23 : vector<128x1xf32> to vector<128x128xf32>
    %25 = arith.subf %21, %24 : vector<128x128xf32>
    %26 = math.exp %25 : vector<128x128xf32>
    %cst_11 = arith.constant dense<0.000000e+00> : vector<128xf32>
    %27 = vector.multi_reduction <add>, %26, %cst_11 [1] : vector<128x128xf32> to vector<128xf32>
    %28 = vector.shape_cast %27 : vector<128xf32> to vector<128x1xf32>
    %29 = tpu.reciprocal %28 {approx = true} : vector<128x1xf32> -> vector<128x1xf32>
    %30 = vector.broadcast %29 : vector<128x1xf32> to vector<128x128xf32>
    %31 = arith.mulf %26, %30 : vector<128x128xf32>
    %c0_12 = arith.constant 0 : index
    %c0_13 = arith.constant 0 : index
    %c0_14 = arith.constant 0 : index
    %32 = vector.load %arg7[%c0_12, %c0_13, %c0_14] : memref<1x128x128xf32, #tpu.memory_space<vmem>>, vector<1x128x128xf32>
    %33 = vector.shape_cast %32 : vector<1x128x128xf32> to vector<128x128xf32>
    %34 = vector.shape_cast %31 : vector<128x128xf32> to vector<1x128x128xf32>
    tpu.vector_store %arg7[%c0_12, %c0_13, %c0_14], %34 {strides = array<i32>} : memref<1x128x128xf32, #tpu.memory_space<vmem>>, vector<1x128x128xf32>,
    %35 = arith.truncf %31 : vector<128x128xf32> to vector<128x128xbf16>
    %cst_15 = arith.constant dense<0.000000e+00> : vector<16x128xf32>
    %36 = tpu.matmul %7, %35, %cst_15 {dimension_numbers = #tpu.dot_dimension_numbers<[1], [1], [0], [0], [0, 0, 1, 0], [], []>} : vector<16x128xbf16>, vector<128x128xbf16>, vector<16x128xf32> -> vector<16x128xf32>
    %c0_16 = arith.constant 0 : index
    %37 = memref.load %arg5[%c0_16] : memref<1xf32, #tpu.memory_space<smem>>
    %38 = vector.broadcast %37 : f32 to vector<16x128xf32>
    %39 = arith.mulf %38, %36 : vector<16x128xf32>
    %40 = arith.addf %39, %6 : vector<16x128xf32>
    %c0_17 = arith.constant 0 : index
    %c0_18 = arith.constant 0 : index
    %c0_19 = arith.constant 0 : index
    %41 = vector.load %arg6[%c0_17, %c0_18, %c0_19] : memref<1x16x128xf32, #tpu.memory_space<vmem>>, vector<1x16x128xf32>
    %42 = vector.shape_cast %41 : vector<1x16x128xf32> to vector<16x128xf32>
    %43 = vector.shape_cast %40 : vector<16x128xf32> to vector<1x16x128xf32>
    tpu.vector_store %arg6[%c0_17, %c0_18, %c0_19], %43 {strides = array<i32>} : memref<1x16x128xf32, #tpu.memory_space<vmem>>, vector<1x16x128xf32>,
    return
  }
  func.func @transform_0(%arg0: i32, %arg1: i32) -> (i32, i32, i32) {
    %c0_i32 = arith.constant 0 : i32
    %c0_i32_0 = arith.constant 0 : i32
    %c0_i32_1 = arith.constant 0 : i32
    return %arg0, %c0_i32, %c0_i32_0 : i32, i32, i32
  }
  func.func @transform_1(%arg0: i32, %arg1: i32) -> (i32, i32) {
    %c0_i32 = arith.constant 0 : i32
    %c0_i32_0 = arith.constant 0 : i32
    %c0_i32_1 = arith.constant 0 : i32
    return %c0_i32, %c0_i32_0 : i32, i32
  }
  func.func @transform_2(%arg0: i32, %arg1: i32) -> (i32, i32) {
    %c0_i32 = arith.constant 0 : i32
    %c0_i32_0 = arith.constant 0 : i32
    %c0_i32_1 = arith.constant 0 : i32
    return %c0_i32, %c0_i32_0 : i32, i32
  }
  func.func @transform_3(%arg0: i32, %arg1: i32) -> i32 {
    %c0_i32 = arith.constant 0 : i32
    %c0_i32_0 = arith.constant 0 : i32
    return %c0_i32 : i32
  }
  func.func @transform_4(%arg0: i32, %arg1: i32) -> (i32, i32, i32) {
    %c0_i32 = arith.constant 0 : i32
    %c0_i32_0 = arith.constant 0 : i32
    return %arg0, %c0_i32, %arg1 : i32, i32, i32
  }
  func.func @transform_5(%arg0: i32, %arg1: i32) -> (i32, i32, i32) {
    %c0_i32 = arith.constant 0 : i32
    %c0_i32_0 = arith.constant 0 : i32
    return %arg0, %arg1, %c0_i32 : i32, i32, i32
  }
}

</mosaic_0001>

<llo_original>
// kernel: tpu_custom_call.1
$region0: #{tpu_custom_call.1}
  #allocation0 [shape = 'u32[]', space=smem, size = 0x4, offset = 0x4, fixed_abs, tag = 'smem constant byte address 0x4 - core index']
  #allocation1 [shape = 'u32[72,128]{1,0:T(1,128)}', space=vmem, size = 0x9000, scoped, tag = 'internal scratch']
  #allocation2 [shape = 'f32[1]{0:T(128)S(6)}', space=smem, size = 0x200, scoped, tag = 'scoped memory for tpu_custom_call.1']
  %s0 = inlined_call_operand.hbm [shape: f32[2,16,128], index: 0, kind: input, shape index: {}]
  %s1 = inlined_call_operand.vmem [shape: f32[16,16], index: 1, kind: input, shape index: {}]
  %s2 = inlined_call_operand.vmem [shape: f32[16,1], index: 2, kind: input, shape index: {}]
  %s3 = inlined_call_operand.<no memory space> [shape: f32[1], index: 3, kind: input, shape index: {}]
  %s4 = inlined_call_operand.hbm [shape: f32[2,16,128], index: 4, kind: output, shape index: {0}]
  %s5 = inlined_call_operand.hbm [shape: f32[2,128,128], index: 5, kind: output, shape index: {1}]
  %6 = xla_tuple %s4, %s5
  %s7 = sld [smem:[#allocation0]]
  $region61: #{tpu_custom_call.1} parent=0
    _
  %s9 = ssub.s32 1, %s7
  %s10 = scalar_select 0, %s9, %s7
  %11 = sst [smem:[#allocation2]] %s3
  $region1: #{tpu_custom_call.1} parent=0
    #allocation3 [shape = 'u8[16384]{0}', space=vmem, size = 0x4000, scoped, tag = 'input window, operand 0']
    #allocation4 [shape = 's32[2]{0}', space=sflag, size = 0x8, scoped, tag = 'scoped memory for tpu_custom_call.1']
    #allocation5 [shape = 's32[2]{0}', space=sflag, size = 0x8, scoped, tag = 'scoped memory for tpu_custom_call.1']
    #allocation6 [shape = 'u8[16384]{0}', space=vmem, size = 0x4000, scoped, tag = 'output window, operand 0']
    #allocation7 [shape = 'u8[131072]{0}', space=vmem, size = 0x20000, scoped, tag = 'output window, operand 1']
    #allocation8 [shape = 's32[2]{0}', space=sflag, size = 0x8, scoped, tag = 'scoped memory for tpu_custom_call.1']
    %12 = vsyncpa [#allocation4], 0
    %s13 = scalar_lea.sflag [#allocation4], 1
    %14 = vsyncpa %s13, 0
    %15 = vsyncpa [#allocation5], 0
    %s16 = scalar_lea.sflag [#allocation5], 1
    %17 = vsyncpa %s16, 0
    %18 = vsyncpa [#allocation8], 0
    %s19 = scalar_lea.sflag [#allocation8], 1
    %20 = vsyncpa %s19, 0
    loop: start=0, step=1, limit=4
    $region2: #{tpu_custom_call.1} parent=1 // loop_pre_header
      _
    $region3: #{tpu_custom_call.1} parent=1 // loop_header
      %s22 = sphi 0, %s26
      %p23 = scmp.ge.s32.totalorder %s22, 4
      %s29 = sphi 0, %s41
      %s30 = sphi 0, %s37
      %s31 = sphi 0, %s29
      %s32 = sphi 0, %s30
      %s33 = sphi 0, %s31
      %s34 = sphi 0, %s32
      %s44 = sphi 0, %s46
      %s47 = sphi 0, %s44
      %s48 = sphi 0, %s47
      %s64 = sphi 0, %s48
      %s68 = sphi 0, %s68
      %s70 = sphi 0, %s68
      %s71 = sphi 0, %s70
      %s85 = sphi 0, %s71
      %s89 = sphi 0, %s89
      %s91 = sphi 0, %s89
      %s92 = sphi 0, %s91
      %s106 = sphi 0, %s92
      %s110 = sphi 0, %s110
      %s112 = sphi 0, %s110
      %s113 = sphi 0, %s112
      %s127 = sphi 0, %s113
      %s135 = sphi 0, %s137
      %s138 = sphi 0, %s135
      %s139 = sphi 0, %s138
      %s155 = sphi 0, %s139
      %s163 = sphi 0, %s165
      %s166 = sphi 0, %s163
      %s167 = sphi 0, %s166
      %s183 = sphi 0, %s167
    $region4: #{tpu_custom_call.1} parent=1 // loop_header_branch
      %25 = sbr.rel (%p23) target = $region8
    $region5: #{tpu_custom_call.1} parent=1 // loop_body
      %s27 = ssub.s32 %s22, 1
      %s28 = ssub.s32 %s22, 2
      %s35 = sadd.s32 1, %s30
      %p36 = scmp.ge.s32.totalorder %s35, 1
      %s37 = scalar_select %p36, 0, %s35
      %s38 = sadd.s32 1, %s29
      %s39 = scalar_select %p36, %s38, %s29
      %p40 = scmp.ge.s32.totalorder %s39, 2
      %s41 = scalar_select %p40, 0, %s39
      %s42 = ssub.s32 %s29, %s41
      %p43 = scmp.eq.s32.totalorder %s42, 0
      %s45 = sadd.s32 %s44, 1
      %s46 = scalar_select %p43, %s44, %s45
      %p49 = pneg %p43
      %p50 = scmp.eq.s32.totalorder %s22, 1
      %p51 = por %p49, %p50
      %p52 = scmp.ne.s32.totalorder %s44, %s47
      %p53 = scmp.eq.s32.totalorder %s22, 0
      %p54 = por %p52, %p53
      %p55 = scmp.ne.s32.totalorder %s44, %s47
      %p56 = scmp.eq.s32.totalorder %s27, 1
      %p57 = por %p55, %p56
      %p58 = scmp.ne.s32.totalorder %s47, %s48
      %p59 = scmp.eq.s32.totalorder %s27, 0
      %p60 = por %p58, %p59
      %p61 = scmp.ne.s32.totalorder %s47, %s48
      %p62 = scmp.eq.s32.totalorder %s28, 1
      %p63 = por %p61, %p62
      %p65 = scmp.ne.s32.totalorder %s48, %s64
      %p66 = scmp.eq.s32.totalorder %s28, 0
      %p67 = por %p65, %p66
      %s69 = sadd.s32 %s68, 1
      %p72 = scmp.eq.s32.totalorder %s22, 1
      %p73 = scmp.ne.s32.totalorder %s68, %s70
      %p74 = scmp.eq.s32.totalorder %s22, 0
      %p75 = por %p73, %p74
      %p76 = scmp.ne.s32.totalorder %s68, %s70
      %p77 = scmp.eq.s32.totalorder %s27, 1
      %p78 = por %p76, %p77
      %p79 = scmp.ne.s32.totalorder %s70, %s71
      %p80 = scmp.eq.s32.totalorder %s27, 0
      %p81 = por %p79, %p80
      %p82 = scmp.ne.s32.totalorder %s70, %s71
      %p83 = scmp.eq.s32.totalorder %s28, 1
      %p84 = por %p82, %p83
      %p86 = scmp.ne.s32.totalorder %s71, %s85
      %p87 = scmp.eq.s32.totalorder %s28, 0
      %p88 = por %p86, %p87
      %s90 = sadd.s32 %s89, 1
      %p93 = scmp.eq.s32.totalorder %s22, 1
      %p94 = scmp.ne.s32.totalorder %s89, %s91
      %p95 = scmp.eq.s32.totalorder %s22, 0
      %p96 = por %p94, %p95
      %p97 = scmp.ne.s32.totalorder %s89, %s91
      %p98 = scmp.eq.s32.totalorder %s27, 1
      %p99 = por %p97, %p98
      %p100 = scmp.ne.s32.totalorder %s91, %s92
      %p101 = scmp.eq.s32.totalorder %s27, 0
      %p102 = por %p100, %p101
      %p103 = scmp.ne.s32.totalorder %s91, %s92
      %p104 = scmp.eq.s32.totalorder %s28, 1
      %p105 = por %p103, %p104
      %p107 = scmp.ne.s32.totalorder %s92, %s106
      %p108 = scmp.eq.s32.totalorder %s28, 0
      %p109 = por %p107, %p108
      %s111 = sadd.s32 %s110, 1
      %p114 = scmp.eq.s32.totalorder %s22, 1
      %p115 = scmp.ne.s32.totalorder %s110, %s112
      %p116 = scmp.eq.s32.totalorder %s22, 0
      %p117 = por %p115, %p116
      %p118 = scmp.ne.s32.totalorder %s110, %s112
      %p119 = scmp.eq.s32.totalorder %s27, 1
      %p120 = por %p118, %p119
      %p121 = scmp.ne.s32.totalorder %s112, %s113
      %p122 = scmp.eq.s32.totalorder %s27, 0
      %p123 = por %p121, %p122
      %p124 = scmp.ne.s32.totalorder %s112, %s113
      %p125 = scmp.eq.s32.totalorder %s28, 1
      %p126 = por %p124, %p125
      %p128 = scmp.ne.s32.totalorder %s113, %s127
      %p129 = scmp.eq.s32.totalorder %s28, 0
      %p130 = por %p128, %p129
      %s131 = ssub.s32 %s29, %s41
      %s132 = ssub.s32 %s30, %s37
      %s133 = sor.u32 %s131, %s132
      %p134 = scmp.eq.s32.totalorder %s133, 0
      %s136 = sadd.s32 %s135, 1
      %s137 = scalar_select %p134, %s135, %s136
      %p140 = pneg %p134
      %p141 = scmp.eq.s32.totalorder %s22, 1
      %p142 = por %p140, %p141
      %p143 = scmp.ne.s32.totalorder %s135, %s138
      %p144 = scmp.eq.s32.totalorder %s22, 0
      %p145 = por %p143, %p144
      %p146 = scmp.ne.s32.totalorder %s135, %s138
      %p147 = scmp.eq.s32.totalorder %s27, 1
      %p148 = por %p146, %p147
      %p149 = scmp.ne.s32.totalorder %s138, %s139
      %p150 = scmp.eq.s32.totalorder %s27, 0
      %p151 = por %p149, %p150
      %p152 = scmp.ne.s32.totalorder %s138, %s139
      %p153 = scmp.eq.s32.totalorder %s28, 1
      %p154 = por %p152, %p153
      %p156 = scmp.ne.s32.totalorder %s139, %s155
      %p157 = scmp.eq.s32.totalorder %s28, 0
      %p158 = por %p156, %p157
      %s159 = ssub.s32 %s29, %s41
      %s160 = ssub.s32 %s30, %s37
      %s161 = sor.u32 %s159, %s160
      %p162 = scmp.eq.s32.totalorder %s161, 0
      %s164 = sadd.s32 %s163, 1
      %s165 = scalar_select %p162, %s163, %s164
      %p168 = pneg %p162
      %p169 = scmp.eq.s32.totalorder %s22, 1
      %p170 = por %p168, %p169
      %p171 = scmp.ne.s32.totalorder %s163, %s166
      %p172 = scmp.eq.s32.totalorder %s22, 0
      %p173 = por %p171, %p172
      %p174 = scmp.ne.s32.totalorder %s163, %s166
      %p175 = scmp.eq.s32.totalorder %s27, 1
      %p176 = por %p174, %p175
      %p177 = scmp.ne.s32.totalorder %s166, %s167
      %p178 = scmp.eq.s32.totalorder %s27, 0
      %p179 = por %p177, %p178
      %p180 = scmp.ne.s32.totalorder %s166, %s167
      %p181 = scmp.eq.s32.totalorder %s28, 1
      %p182 = por %p180, %p181
      %p184 = scmp.ne.s32.totalorder %s167, %s183
      %p185 = scmp.eq.s32.totalorder %s28, 0
      %p186 = por %p184, %p185
      %p187 = scmp.le.s32.totalorder 1, %s22
      %p188 = scmp.lt.s32.totalorder %s22, 3
      %p189 = pnand %p187, %p188
      %p190 = pneg %p189
      // Predicated region
      $region9: #{tpu_custom_call.1} parent=5 // pred_check
        _
      $region10: #{tpu_custom_call.1} parent=5 // pred_check_branch
        %192 = sbr.rel (%p189) target = $region12
      $region11: #{tpu_custom_call.1} parent=5 // pred_region
        %s193 = ssub.s32 %s22, 1
        // Predicated region
        $region13: #{tpu_custom_call.1} parent=11 // pred_check
          %p194 = pneg %p81
        $region14: #{tpu_custom_call.1} parent=11 // pred_check_branch
          %196 = sbr.rel (%p194) target = $region16
        $region15: #{tpu_custom_call.1} parent=11 // pred_region
          _
        $region16: #{tpu_custom_call.1} parent=11 // pred_fallthru
          _
        // Predicated region
        $region17: #{tpu_custom_call.1} parent=11 // pred_check
          %p197 = pneg %p102
        $region18: #{tpu_custom_call.1} parent=11 // pred_check_branch
          %199 = sbr.rel (%p197) target = $region20
        $region19: #{tpu_custom_call.1} parent=11 // pred_region
          _
        $region20: #{tpu_custom_call.1} parent=11 // pred_fallthru
          _
        // Predicated region
        $region21: #{tpu_custom_call.1} parent=11 // pred_check
          %p200 = pneg %p123
        $region22: #{tpu_custom_call.1} parent=11 // pred_check_branch
          %202 = sbr.rel (%p200) target = $region24
        $region23: #{tpu_custom_call.1} parent=11 // pred_region
          _
        $region24: #{tpu_custom_call.1} parent=11 // pred_fallthru
          _
      $region12: #{tpu_custom_call.1} parent=5 // pred_fallthru
        _
      %p203 = scmp.lt.s32.totalorder %s22, 2
      // Predicated region
      $region25: #{tpu_custom_call.1} parent=5 // pred_check
        %p204 = pneg %p203
      $region26: #{tpu_custom_call.1} parent=5 // pred_check_branch
        %206 = sbr.rel (%p204) target = $region28
      $region27: #{tpu_custom_call.1} parent=5 // pred_region
        // Predicated region
        $region29: #{tpu_custom_call.1} parent=27 // pred_check
          %p207 = pneg %p54
        $region30: #{tpu_custom_call.1} parent=27 // pred_check_branch
          %209 = sbr.rel (%p207) target = $region32
        $region31: #{tpu_custom_call.1} parent=27 // pred_region
          %s210 = sand.u32 %s44, 1
          %s211 = scalar_lea.sflag [#allocation4], %s210
          %s212 = sand.u32 %s44, 1
          %s213 = smul.addr %s212, 16
          %s214 = scalar_lea.vmem [#allocation3], %s213
          %216 = vsyncadd %s211, 0
          %s217 = smul.addr %s29, 2
          %s218 = smul.addr %s217, 8
          %s219 = scalar_lea.hbm %s0, %s218
          %s220 = sshll.u32 %s219, 4
          %s221 = int_to_ptr.hbm [resolvable:$true] %s220
          %s222 = sshll.u32 %s214, 4
          %s223 = int_to_ptr.vmem [resolvable:$true] %s222
          %228 = dma.hbm_to_vmem [thread:$0]  %s221, 256, %s223, %s211, 128, 128, 8
        $region32: #{tpu_custom_call.1} parent=27 // pred_fallthru
          _
      $region28: #{tpu_custom_call.1} parent=5 // pred_fallthru
        _
      %p229 = scmp.le.s32.totalorder 1, %s22
      %p230 = scmp.lt.s32.totalorder %s22, 3
      %p231 = pnand %p229, %p230
      %p232 = pneg %p231
      // Predicated region
      $region33: #{tpu_custom_call.1} parent=5 // pred_check
        _
      $region34: #{tpu_custom_call.1} parent=5 // pred_check_branch
        %234 = sbr.rel (%p231) target = $region36
      $region35: #{tpu_custom_call.1} parent=5 // pred_region
        %s235 = ssub.s32 %s22, 1
        %s236 = sand.u32 %s47, 1
        %s237 = scalar_lea.sflag [#allocation4], %s236
        %s238 = sand.u32 %s47, 1
        %s239 = smul.addr %s238, 16
        %s240 = scalar_lea.vmem [#allocation3], %s239
        // Predicated region
        $region37: #{tpu_custom_call.1} parent=35 // pred_check
          %p241 = pneg %p60
        $region38: #{tpu_custom_call.1} parent=35 // pred_check_branch
          %243 = sbr.rel (%p241) target = $region40
        $region39: #{tpu_custom_call.1} parent=35 // pred_region
          %245 = dma.done %s237, 256
        $region40: #{tpu_custom_call.1} parent=35 // pred_fallthru
          _
        %s246 = sand.u32 %s47, 1
        %s247 = scalar_lea.sflag [#allocation4], %s246
        %s248 = sand.u32 %s47, 1
        %s249 = smul.addr %s248, 16
        %s250 = scalar_lea.vmem [#allocation3], %s249
        %p251 = pneg %p60
        %p252 = pneg %p57
        %p253 = pneg %p81
        %p254 = pneg %p78
        %p255 = pneg %p102
        %p256 = pneg %p99
        %p257 = pneg %p123
        %p258 = pneg %p120
        %p259 = pneg %p151
        %p260 = pneg %p148
        %s261 = sand.u32 %s138, 1
        %s262 = scalar_lea.sflag [#allocation5], %s261
        %s263 = sand.u32 %s138, 1
        %s264 = smul.addr %s263, 16
        %s265 = scalar_lea.vmem [#allocation6], %s264
        %p266 = pneg %p179
        %p267 = pneg %p176
        %s268 = sand.u32 %s166, 1
        %s269 = scalar_lea.sflag [#allocation8], %s268
        %s270 = sand.u32 %s166, 1
        %s271 = smul.addr %s270, 128
        %s272 = scalar_lea.vmem [#allocation7], %s271
        %s273 = smul.u32 16, %s32
        %s275 = smul.u32 %s32, 128
        %v276 = vld [vmem:[%s240] sm:$0xff]
        %v277 = vld [vmem:[%s240 + $0x8] sm:$0xff]
        %s278 = sshra.s32 %s275, 7
        %s279 = sand.u32 %s275, 127
        %s280 = scalar_lea.vmem %s240, %s278 [#allocation3]
        %v281 = vld [vmem:[%s280] sm:$0xff]
        %v282 = vld [vmem:[%s280 + $0x8] sm:$0xff]
        %v283 = vpack.c.bf16 %v277, %v276
        %v284 = vld [vmem:[%s1] sm:$0xff]
        %v285 = vld [vmem:[%s1 + $0x8] sm:$0xff]
        %v286 = vpack.c.bf16 %v285, %v284
        %v287 = vpack.c.bf16 %v282, %v281
        %v288 = vld [vmem:[%s2] sm:$0xff]
        %v289 = vld [vmem:[%s2 + $0x8] sm:$0xff]
        %291 = vset.pattern.permute.xlu0 0
        %292 = vperm.xlu0 %291, %v288
        %v293 = vpop.permute.xlu0 %292
        %296 = vset.pattern.permute.xlu0 0
        %297 = vperm.xlu0 %296, %v289
        %v298 = vpop.permute.xlu0 %297
        %vm300 = vcmask 130048
        %v302 = vsel %vm300, %v286, 0
        %304 = vmatpush.bf16.msra.mxu0 0
        %305 = vmatpush.bf16.msra.mxu0 0
        %306 = vmatpush.bf16.msra.mxu0 0
        %307 = vmatpush.bf16.msra.mxu0 0
        %308 = vmatpush.bf16.msra.mxu0 0
        %309 = vmatpush.bf16.msra.mxu0 0
        %310 = vmatpush.bf16.msra.mxu0 0
        %311 = vmatpush.bf16.msra.mxu0 %v287
        %312 = vmatmul.bf16.gmra.mxu0 %v302
        %v313 = vpop.f32.mrf.mxu0
        %v314 = vadd.f32 %v293, %v313
        %v315 = vpop.f32.mrf.mxu0
        %v316 = vadd.f32 %v298, %v315
        %317 = vdwg.mxu0
        %v318 = vpack.c.bf16 %v316, %v314
        %319 = vxpose.xlu0.c.b16.start [1/8] %v318, 128
        %320 = vxpose.xlu0.c.b16.cont [2/8] 0, 128
        %321 = vxpose.xlu0.c.b16.cont [3/8] 0, 128
        %322 = vxpose.xlu0.c.b16.cont [4/8] 0, 128
        %323 = vxpose.xlu0.c.b16.cont [5/8] 0, 128
        %324 = vxpose.xlu0.c.b16.cont [6/8] 0, 128
        %325 = vxpose.xlu0.c.b16.cont [7/8] 0, 128
        %326 = vxpose.xlu0.c.b16.end [8/8] 0, 128
        %v327 = vpop.trf.xlu0
        %v328 = vpop.trf.xlu0
        %v329 = vpop.trf.xlu0
        %v330 = vpop.trf.xlu0
        %v331 = vpop.trf.xlu0
        %v332 = vpop.trf.xlu0
        %v333 = vpop.trf.xlu0
        %v334 = vpop.trf.xlu0
        %v336 = vsel %vm300, %v327, 0
        %v339 = vsel %vm300, %v328, 0
        %v342 = vsel %vm300, %v329, 0
        %v345 = vsel %vm300, %v330, 0
        %v348 = vsel %vm300, %v331, 0
        %v351 = vsel %vm300, %v332, 0
        %v354 = vsel %vm300, %v333, 0
        %v357 = vsel %vm300, %v334, 0
        %359 = vmatpush.bf16.msra.mxu0 0
        %360 = vmatpush.bf16.msra.mxu0 0
        %361 = vmatpush.bf16.msra.mxu0 0
        %362 = vmatpush.bf16.msra.mxu0 0
        %363 = vmatpush.bf16.msra.mxu0 0
        %364 = vmatpush.bf16.msra.mxu0 0
        %365 = vmatpush.bf16.msra.mxu0 0
        %366 = vmatpush.bf16.msra.mxu0 %v283
        %367 = vmatmul.bf16.gmra.mxu0 %v336
        %v368 = vpop.f32.mrf.mxu0
        %v369 = vadd.f32 0.0, %v368
        %v370 = vpop.f32.mrf.mxu0
        %v371 = vadd.f32 0.0, %v370
        %372 = vmatmul.bf16.gmra.mxu0 %v339
        %v373 = vpop.f32.mrf.mxu0
        %v374 = vadd.f32 0.0, %v373
        %v375 = vpop.f32.mrf.mxu0
        %v376 = vadd.f32 0.0, %v375
        %377 = vmatmul.bf16.gmra.mxu0 %v342
        %v378 = vpop.f32.mrf.mxu0
        %v379 = vadd.f32 0.0, %v378
        %v380 = vpop.f32.mrf.mxu0
        %v381 = vadd.f32 0.0, %v380
        %382 = vmatmul.bf16.gmra.mxu0 %v345
        %v383 = vpop.f32.mrf.mxu0
        %v384 = vadd.f32 0.0, %v383
        %v385 = vpop.f32.mrf.mxu0
        %v386 = vadd.f32 0.0, %v385
        %387 = vmatmul.bf16.gmra.mxu0 %v348
        %v388 = vpop.f32.mrf.mxu0
        %v389 = vadd.f32 0.0, %v388
        %v390 = vpop.f32.mrf.mxu0
        %v391 = vadd.f32 0.0, %v390
        %392 = vmatmul.bf16.gmra.mxu0 %v351
        %v393 = vpop.f32.mrf.mxu0
        %v394 = vadd.f32 0.0, %v393
        %v395 = vpop.f32.mrf.mxu0
        %v396 = vadd.f32 0.0, %v395
        %397 = vmatmul.bf16.gmra.mxu0 %v354
        %v398 = vpop.f32.mrf.mxu0
        %v399 = vadd.f32 0.0, %v398
        %v400 = vpop.f32.mrf.mxu0
        %v401 = vadd.f32 0.0, %v400
        %402 = vmatmul.bf16.gmra.mxu0 %v357
        %v403 = vpop.f32.mrf.mxu0
        %v404 = vadd.f32 0.0, %v403
        %v405 = vpop.f32.mrf.mxu0
        %v406 = vadd.f32 0.0, %v405
        %407 = vdwg.mxu0
        %v408 = vlaneseq
        %v409 = vand.u32 %v408, 127
        %vm410 = vcmp.lt.s32.totalorder %v409, 64
        %v411 = vsel %vm410, %v369, -1e+30
        %v412 = vsel %vm410, %v371, -1e+30
        %v413 = vsel %vm410, %v374, -1e+30
        %v414 = vsel %vm410, %v376, -1e+30
        %v415 = vsel %vm410, %v379, -1e+30
        %v416 = vsel %vm410, %v381, -1e+30
        %v417 = vsel %vm410, %v384, -1e+30
        %v418 = vsel %vm410, %v386, -1e+30
        %v419 = vsel %vm410, %v389, -1e+30
        %v420 = vsel %vm410, %v391, -1e+30
        %v421 = vsel %vm410, %v394, -1e+30
        %v422 = vsel %vm410, %v396, -1e+30
        %v423 = vsel %vm410, %v399, -1e+30
        %v424 = vsel %vm410, %v401, -1e+30
        %v425 = vsel %vm410, %v404, -1e+30
        %v426 = vsel %vm410, %v406, -1e+30
        %427 = vmax.xlane.f32.xlu0 %v411
        %v428 = vpop.xlane.xlu0 %427
        %429 = vmax.xlane.f32.xlu0 %v412
        %v430 = vpop.xlane.xlu0 %429
        %431 = vmax.xlane.f32.xlu0 %v413
        %v432 = vpop.xlane.xlu0 %431
        %433 = vmax.xlane.f32.xlu0 %v414
        %v434 = vpop.xlane.xlu0 %433
        %435 = vmax.xlane.f32.xlu0 %v415
        %v436 = vpop.xlane.xlu0 %435
        %437 = vmax.xlane.f32.xlu0 %v416
        %v438 = vpop.xlane.xlu0 %437
        %439 = vmax.xlane.f32.xlu0 %v417
        %v440 = vpop.xlane.xlu0 %439
        %441 = vmax.xlane.f32.xlu0 %v418
        %v442 = vpop.xlane.xlu0 %441
        %443 = vmax.xlane.f32.xlu0 %v419
        %v444 = vpop.xlane.xlu0 %443
        %445 = vmax.xlane.f32.xlu0 %v420
        %v446 = vpop.xlane.xlu0 %445
        %447 = vmax.xlane.f32.xlu0 %v421
        %v448 = vpop.xlane.xlu0 %447
        %449 = vmax.xlane.f32.xlu0 %v422
        %v450 = vpop.xlane.xlu0 %449
        %451 = vmax.xlane.f32.xlu0 %v423
        %v452 = vpop.xlane.xlu0 %451
        %453 = vmax.xlane.f32.xlu0 %v424
        %v454 = vpop.xlane.xlu0 %453
        %455 = vmax.xlane.f32.xlu0 %v425
        %v456 = vpop.xlane.xlu0 %455
        %457 = vmax.xlane.f32.xlu0 %v426
        %v458 = vpop.xlane.xlu0 %457
        %v459 = vsub.f32 %v411, %v428
        %v460 = vsub.f32 %v412, %v430
        %v461 = vsub.f32 %v413, %v432
        %v462 = vsub.f32 %v414, %v434
        %v463 = vsub.f32 %v415, %v436
        %v464 = vsub.f32 %v416, %v438
        %v465 = vsub.f32 %v417, %v440
        %v466 = vsub.f32 %v418, %v442
        %v467 = vsub.f32 %v419, %v444
        %v468 = vsub.f32 %v420, %v446
        %v469 = vsub.f32 %v421, %v448
        %v470 = vsub.f32 %v422, %v450
        %v471 = vsub.f32 %v423, %v452
        %v472 = vsub.f32 %v424, %v454
        %v473 = vsub.f32 %v425, %v456
        %v474 = vsub.f32 %v426, %v458
        %v475 = vmul.f32 %v459, 1.442695
        %v476 = vpow.pop %v475
        %v477 = vmul.f32 %v460, 1.442695
        %v478 = vpow.pop %v477
        %v479 = vmul.f32 %v461, 1.442695
        %v480 = vpow.pop %v479
        %v481 = vmul.f32 %v462, 1.442695
        %v482 = vpow.pop %v481
        %v483 = vmul.f32 %v463, 1.442695
        %v484 = vpow.pop %v483
        %v485 = vmul.f32 %v464, 1.442695
        %v486 = vpow.pop %v485
        %v487 = vmul.f32 %v465, 1.442695
        %v488 = vpow.pop %v487
        %v489 = vmul.f32 %v466, 1.442695
        %v490 = vpow.pop %v489
        %v491 = vmul.f32 %v467, 1.442695
        %v492 = vpow.pop %v491
        %v493 = vmul.f32 %v468, 1.442695
        %v494 = vpow.pop %v493
        %v495 = vmul.f32 %v469, 1.442695
        %v496 = vpow.pop %v495
        %v497 = vmul.f32 %v470, 1.442695
        %v498 = vpow.pop %v497
        %v499 = vmul.f32 %v471, 1.442695
        %v500 = vpow.pop %v499
        %v501 = vmul.f32 %v472, 1.442695
        %v502 = vpow.pop %v501
        %v503 = vmul.f32 %v473, 1.442695
        %v504 = vpow.pop %v503
        %v505 = vmul.f32 %v474, 1.442695
        %v506 = vpow.pop %v505
        %507 = vadd.xlane.f32.xlu0 %v476
        %v508 = vpop.xlane.xlu0 %507
        %509 = vadd.xlane.f32.xlu0 %v478
        %v510 = vpop.xlane.xlu0 %509
        %511 = vadd.xlane.f32.xlu0 %v480
        %v512 = vpop.xlane.xlu0 %511
        %513 = vadd.xlane.f32.xlu0 %v482
        %v514 = vpop.xlane.xlu0 %513
        %515 = vadd.xlane.f32.xlu0 %v484
        %v516 = vpop.xlane.xlu0 %515
        %517 = vadd.xlane.f32.xlu0 %v486
        %v518 = vpop.xlane.xlu0 %517
        %519 = vadd.xlane.f32.xlu0 %v488
        %v520 = vpop.xlane.xlu0 %519
        %521 = vadd.xlane.f32.xlu0 %v490
        %v522 = vpop.xlane.xlu0 %521
        %523 = vadd.xlane.f32.xlu0 %v492
        %v524 = vpop.xlane.xlu0 %523
        %525 = vadd.xlane.f32.xlu0 %v494
        %v526 = vpop.xlane.xlu0 %525
        %527 = vadd.xlane.f32.xlu0 %v496
        %v528 = vpop.xlane.xlu0 %527
        %529 = vadd.xlane.f32.xlu0 %v498
        %v530 = vpop.xlane.xlu0 %529
        %531 = vadd.xlane.f32.xlu0 %v500
        %v532 = vpop.xlane.xlu0 %531
        %533 = vadd.xlane.f32.xlu0 %v502
        %v534 = vpop.xlane.xlu0 %533
        %535 = vadd.xlane.f32.xlu0 %v504
        %v536 = vpop.xlane.xlu0 %535
        %537 = vadd.xlane.f32.xlu0 %v506
        %v538 = vpop.xlane.xlu0 %537
        %v539 = vrcp.pop %v508
        %v540 = vrcp.pop %v510
        %v541 = vrcp.pop %v512
        %v542 = vrcp.pop %v514
        %v543 = vrcp.pop %v516
        %v544 = vrcp.pop %v518
        %v545 = vrcp.pop %v520
        %v546 = vrcp.pop %v522
        %v547 = vrcp.pop %v524
        %v548 = vrcp.pop %v526
        %v549 = vrcp.pop %v528
        %v550 = vrcp.pop %v530
        %v551 = vrcp.pop %v532
        %v552 = vrcp.pop %v534
        %v553 = vrcp.pop %v536
        %v554 = vrcp.pop %v538
        %v555 = vmul.f32 %v476, %v539
        %v556 = vmul.f32 %v478, %v540
        %v557 = vmul.f32 %v480, %v541
        %v558 = vmul.f32 %v482, %v542
        %v559 = vmul.f32 %v484, %v543
        %v560 = vmul.f32 %v486, %v544
        %v561 = vmul.f32 %v488, %v545
        %v562 = vmul.f32 %v490, %v546
        %v563 = vmul.f32 %v492, %v547
        %v564 = vmul.f32 %v494, %v548
        %v565 = vmul.f32 %v496, %v549
        %v566 = vmul.f32 %v498, %v550
        %v567 = vmul.f32 %v500, %v551
        %v568 = vmul.f32 %v502, %v552
        %v569 = vmul.f32 %v504, %v553
        %v570 = vmul.f32 %v506, %v554
        %571 = vst [vmem:[%s272] sm:$0xff] %v555
        %572 = vst [vmem:[%s272 + $0x8] sm:$0xff] %v556
        %573 = vst [vmem:[%s272 + $0x10] sm:$0xff] %v557
        %574 = vst [vmem:[%s272 + $0x18] sm:$0xff] %v558
        %575 = vst [vmem:[%s272 + $0x20] sm:$0xff] %v559
        %576 = vst [vmem:[%s272 + $0x28] sm:$0xff] %v560
        %577 = vst [vmem:[%s272 + $0x30] sm:$0xff] %v561
        %578 = vst [vmem:[%s272 + $0x38] sm:$0xff] %v562
        %579 = vst [vmem:[%s272 + $0x40] sm:$0xff] %v563
        %580 = vst [vmem:[%s272 + $0x48] sm:$0xff] %v564
        %581 = vst [vmem:[%s272 + $0x50] sm:$0xff] %v565
        %582 = vst [vmem:[%s272 + $0x58] sm:$0xff] %v566
        %583 = vst [vmem:[%s272 + $0x60] sm:$0xff] %v567
        %584 = vst [vmem:[%s272 + $0x68] sm:$0xff] %v568
        %585 = vst [vmem:[%s272 + $0x70] sm:$0xff] %v569
        %586 = vst [vmem:[%s272 + $0x78] sm:$0xff] %v570
        %v587 = vpack.c.bf16 %v556, %v555
        %v588 = vpack.c.bf16 %v558, %v557
        %v589 = vpack.c.bf16 %v560, %v559
        %v590 = vpack.c.bf16 %v562, %v561
        %v591 = vpack.c.bf16 %v564, %v563
        %v592 = vpack.c.bf16 %v566, %v565
        %v593 = vpack.c.bf16 %v568, %v567
        %v594 = vpack.c.bf16 %v570, %v569
        %595 = vmatpush.bf16.xpose.msra.mxu0 %v594
        %596 = vmatpush.bf16.xpose.msra.mxu0 %v593
        %597 = vmatpush.bf16.xpose.msra.mxu0 %v592
        %598 = vmatpush.bf16.xpose.msra.mxu0 %v591
        %599 = vmatpush.bf16.xpose.msra.mxu0 %v590
        %600 = vmatpush.bf16.xpose.msra.mxu0 %v589
        %601 = vmatpush.bf16.xpose.msra.mxu0 %v588
        %602 = vmatpush.bf16.xpose.msra.mxu0 %v587
        %603 = vmatmul.bf16.gmra.mxu0 %v283
        %v604 = vpop.f32.mrf.mxu0
        %v605 = vadd.f32 0.0, %v604
        %v606 = vpop.f32.mrf.mxu0
        %v607 = vadd.f32 0.0, %v606
        %608 = vdwg.mxu0
        %s609 = sld [smem:[#allocation2]]
        %v610 = vstv %s609
        %v611 = vmul.f32 %v610, %v605
        %v612 = vmul.f32 %v610, %v607
        %v613 = vadd.f32 %v611, %v281
        %v614 = vadd.f32 %v612, %v282
        %615 = vst [vmem:[%s265] sm:$0xff] %v613
        %616 = vst [vmem:[%s265 + $0x8] sm:$0xff] %v614
        %s617 = sand.u32 %s138, 1
        %s618 = scalar_lea.sflag [#allocation5], %s617
        %s619 = sand.u32 %s138, 1
        %s620 = smul.addr %s619, 16
        %s621 = scalar_lea.vmem [#allocation6], %s620
        %s622 = sand.u32 %s166, 1
        %s623 = scalar_lea.sflag [#allocation8], %s622
        %s624 = sand.u32 %s166, 1
        %s625 = smul.addr %s624, 128
        %s626 = scalar_lea.vmem [#allocation7], %s625
        // Predicated region
        $region41: #{tpu_custom_call.1} parent=35 // pred_check
          %p627 = pneg %p148
        $region42: #{tpu_custom_call.1} parent=35 // pred_check_branch
          %629 = sbr.rel (%p627) target = $region44
        $region43: #{tpu_custom_call.1} parent=35 // pred_region
          %631 = vsyncadd %s618, 0
          %s632 = smul.addr %s31, 2
          %s633 = sadd.s32 %s32, %s632
          %s634 = smul.addr %s633, 8
          %s635 = scalar_lea.hbm %s4, %s634
          %s636 = sshll.u32 %s621, 4
          %s637 = int_to_ptr.vmem [resolvable:$true] %s636
          %s638 = sshll.u32 %s635, 4
          %s639 = int_to_ptr.hbm [resolvable:$true] %s638
          %644 = dma.vmem_to_hbm [thread:$0]  %s637, 256, %s639, %s618, 128, 128, 8
        $region44: #{tpu_custom_call.1} parent=35 // pred_fallthru
          _
        // Predicated region
        $region45: #{tpu_custom_call.1} parent=35 // pred_check
          %p645 = pneg %p176
        $region46: #{tpu_custom_call.1} parent=35 // pred_check_branch
          %647 = sbr.rel (%p645) target = $region48
        $region47: #{tpu_custom_call.1} parent=35 // pred_region
          %s648 = smul.u32 16, %s32
          %650 = vsyncadd %s623, 0
          %s651 = smul.addr %s31, 16
          %s652 = sadd.s32 %s648, %s651
          %s653 = smul.addr %s652, 8
          %s654 = scalar_lea.hbm %s5, %s653
          %s655 = sshll.u32 %s626, 4
          %s656 = int_to_ptr.vmem [resolvable:$true] %s655
          %s657 = sshll.u32 %s654, 4
          %s658 = int_to_ptr.hbm [resolvable:$true] %s657
          %663 = dma.vmem_to_hbm [thread:$0]  %s656, 2048, %s658, %s623, 128, 128, 8
        $region48: #{tpu_custom_call.1} parent=35 // pred_fallthru
          _
      $region36: #{tpu_custom_call.1} parent=5 // pred_fallthru
        _
      %p664 = scmp.le.s32.totalorder 2, %s22
      // Predicated region
      $region49: #{tpu_custom_call.1} parent=5 // pred_check
        %p665 = pneg %p664
      $region50: #{tpu_custom_call.1} parent=5 // pred_check_branch
        %667 = sbr.rel (%p665) target = $region52
      $region51: #{tpu_custom_call.1} parent=5 // pred_region
        %s668 = ssub.s32 %s22, 2
        // Predicated region
        $region53: #{tpu_custom_call.1} parent=51 // pred_check
          %p669 = pneg %p154
        $region54: #{tpu_custom_call.1} parent=51 // pred_check_branch
          %671 = sbr.rel (%p669) target = $region56
        $region55: #{tpu_custom_call.1} parent=51 // pred_region
          %s672 = sand.u32 %s139, 1
          %s673 = scalar_lea.sflag [#allocation5], %s672
          %s674 = sand.u32 %s139, 1
          %s675 = smul.addr %s674, 16
          %s676 = scalar_lea.vmem [#allocation6], %s675
          %678 = dma.done %s673, 256
        $region56: #{tpu_custom_call.1} parent=51 // pred_fallthru
          _
        // Predicated region
        $region57: #{tpu_custom_call.1} parent=51 // pred_check
          %p679 = pneg %p182
        $region58: #{tpu_custom_call.1} parent=51 // pred_check_branch
          %681 = sbr.rel (%p679) target = $region60
        $region59: #{tpu_custom_call.1} parent=51 // pred_region
          %s682 = sand.u32 %s167, 1
          %s683 = scalar_lea.sflag [#allocation8], %s682
          %s684 = sand.u32 %s167, 1
          %s685 = smul.addr %s684, 128
          %s686 = scalar_lea.vmem [#allocation7], %s685
          %688 = dma.done %s683, 2048
        $region60: #{tpu_custom_call.1} parent=51 // pred_fallthru
          _
      $region52: #{tpu_custom_call.1} parent=5 // pred_fallthru
        _
    $region6: #{tpu_custom_call.1} parent=1 // loop_footer
      %s26 = sadd.s32 1, %s22
    $region7: #{tpu_custom_call.1} parent=1 // loop_footer_branch
      %21 = sbr.rel target = $region3
    $region8: #{tpu_custom_call.1} parent=1 // loop_exit
      _
    %689 = vsyncpa [#allocation4], 1
    %s690 = scalar_lea.sflag [#allocation4], 1
    %691 = vsyncpa %s690, 1
    %692 = vsyncpa [#allocation5], 1
    %s693 = scalar_lea.sflag [#allocation5], 1
    %694 = vsyncpa %s693, 1
    %695 = vsyncpa [#allocation8], 1
    %s696 = scalar_lea.sflag [#allocation8], 1
    %697 = vsyncpa %s696, 1

</llo_original>
